<compile_context>
chip_gen: v5e
topology: v5e:2x2
jax: 0.10.0
libtpu: 0.0.40
codegen_flags: <defaults>
</compile_context>

<pallas_src>
import jax
import jax.numpy as jnp
import numpy as np
from jax.experimental import pallas as pl
from jax.experimental.pallas import tpu as pltpu

# Small, module-consistent demo sizes.
INPUT_SIZE = 8
HIDDEN_SIZE = 32
NUM_LAYERS = 2          # hard-coded: two stacked RNN layers in the kernel
NUM_CLASSES = 10
SEQ_LEN = 8
BATCH = 4


def _round_up(n, m):
    return ((n + m - 1) // m) * m


def _pack_layout(input_size, hidden_size):
    """Row offsets of each weight/bias inside the packed (rows, H) array.

    All offsets are multiples of 8 so every in-kernel sublane slice is
    tile-aligned.
    """
    o_wih0 = 0
    o_whh0 = _round_up(input_size, 8)
    o_wih1 = _round_up(o_whh0 + hidden_size, 8)
    o_whh1 = _round_up(o_wih1 + hidden_size, 8)
    o_b0 = _round_up(o_whh1 + hidden_size, 8)
    o_b1 = o_b0 + 8
    o_bfc = o_b1 + 8
    rows = o_bfc + 8
    return dict(o_wih0=o_wih0, o_whh0=o_whh0, o_wih1=o_wih1, o_whh1=o_whh1,
                o_b0=o_b0, o_b1=o_b1, o_bfc=o_bfc, rows=rows)


# --------------------------------------------------------------------------
# Fused Pallas kernel: 2-layer RNN over all timesteps + FC head, one call.
# --------------------------------------------------------------------------
def fused_rnn_fc_kernel(x_ref,      # (B, T, I)  f32, exactly as the user passes it
                        wpk_ref,    # (rows, H)  f32 packed weights + biases
                        wfc_ref,    # (T, H, C)  bf16 FC weight grouped by t
                        o_ref):     # (B, C)     f32 logits (only HBM output)
    B, T, I = x_ref.shape
    H = wpk_ref.shape[1]
    C = o_ref.shape[1]
    lay = _pack_layout(I, H)
    bf16 = jnp.bfloat16
    f32 = jnp.float32

    # ---- Hoisted (once): unpack weights, cast MXU operands to bf16. --------
    wih0_b = wpk_ref[lay["o_wih0"]:lay["o_wih0"] + I, :].astype(bf16)   # (I, H)
    whh0_b = wpk_ref[lay["o_whh0"]:lay["o_whh0"] + H, :].astype(bf16)   # (H, H)
    wih1_b = wpk_ref[lay["o_wih1"]:lay["o_wih1"] + H, :].astype(bf16)   # (H, H)
    whh1_b = wpk_ref[lay["o_whh1"]:lay["o_whh1"] + H, :].astype(bf16)   # (H, H)
    b0 = wpk_ref[lay["o_b0"]:lay["o_b0"] + 1, :]                        # (1, H) f32
    b1 = wpk_ref[lay["o_b1"]:lay["o_b1"] + 1, :]                        # (1, H) f32
    bfc = wpk_ref[lay["o_bfc"]:lay["o_bfc"] + 1, 0:C]                   # (1, C) f32

    # ---- Layer-0 input projection for ALL timesteps, before the recurrence
    # (independent of the chain -> off the serial critical path). ------------
    xall = x_ref[...]                                                   # (B, T, I)
    xp = [jnp.dot(xall[:, t, :].astype(bf16), wih0_b,
                  preferred_element_type=f32) + b0
          for t in range(T)]                                            # T x (B, H)

    # ---- Serial recurrence, fully unrolled (T is small and static). --------
    h1 = jnp.zeros((B, H), f32)
    h2 = jnp.zeros((B, H), f32)
    h2s = []
    for t in range(T):
        h1 = jnp.tanh(xp[t] + jnp.dot(h1.astype(bf16), whh0_b,
                                      preferred_element_type=f32))
        h2 = jnp.tanh(jnp.dot(h1.astype(bf16), wih1_b,
                              preferred_element_type=f32)
                      + jnp.dot(h2.astype(bf16), whh1_b,
                                preferred_element_type=f32)
                      + b1)
        h2s.append(h2.astype(bf16))

    # ---- FC head deferred to the tail: keeps FC matmuls out of the MXU
    # result FIFO while the recurrence chain is draining (v5e/v6e). ----------
    logits = jnp.zeros((B, C), f32) + bfc
    for t in range(T):
        # Equivalent to flat[:, t*H:(t+1)*H] @ Wfc[t*H:(t+1)*H, :].
        logits = logits + jnp.dot(h2s[t], wfc_ref[t],
                                  preferred_element_type=f32)

    o_ref[...] = logits.astype(o_ref.dtype)


# --------------------------------------------------------------------------
# Wrapper: exactly one pallas_call, no surrounding XLA glue.
# --------------------------------------------------------------------------
@jax.jit
def rnn_forward(x, wpk, wfc_pk):
    """x: (B, T, I) float32 -> logits (B, num_classes)."""
    B = x.shape[0]
    C = wfc_pk.shape[2]
    vmem = pl.BlockSpec(memory_space=pltpu.MemorySpace.VMEM)
    return pl.pallas_call(
        fused_rnn_fc_kernel,
        out_shape=jax.ShapeDtypeStruct((B, C), jnp.float32),
        in_specs=[vmem, vmem, vmem],
        out_specs=vmem,
    )(x, wpk, wfc_pk)


# --------------------------------------------------------------------------
# Deterministic parameter init (PyTorch-style U(-1/sqrt(H), 1/sqrt(H))).
# All kernel-side packing / reshaping / bf16 casting happens HERE, once.
# --------------------------------------------------------------------------
def init_params(key, input_size, hidden_size, seq_len, num_classes):
    ks = jax.random.split(key, 12)
    bound_rnn = 1.0 / np.sqrt(hidden_size)
    bound_fc = 1.0 / np.sqrt(hidden_size * seq_len)
    u = lambda k, shape, b: jax.random.uniform(k, shape, jnp.float32, -b, b)

    wih0 = u(ks[0], (hidden_size, input_size), bound_rnn)
    whh0 = u(ks[1], (hidden_size, hidden_size), bound_rnn)
    bih0 = u(ks[2], (hidden_size,), bound_rnn)
    bhh0 = u(ks[3], (hidden_size,), bound_rnn)
    wih1 = u(ks[4], (hidden_size, hidden_size), bound_rnn)
    whh1 = u(ks[5], (hidden_size, hidden_size), bound_rnn)
    bih1 = u(ks[6], (hidden_size,), bound_rnn)
    bhh1 = u(ks[7], (hidden_size,), bound_rnn)
    wfc = u(ks[8], (num_classes, hidden_size * seq_len), bound_fc)
    bfc = u(ks[9], (num_classes,), bound_fc)

    # Packed RNN weights + biases (f32), 8-row-aligned offsets.
    lay = _pack_layout(input_size, hidden_size)
    wpk = jnp.zeros((lay["rows"], hidden_size), jnp.float32)
    wpk = wpk.at[lay["o_wih0"]:lay["o_wih0"] + input_size, :].set(wih0.T)
    wpk = wpk.at[lay["o_whh0"]:lay["o_whh0"] + hidden_size, :].set(whh0.T)
    wpk = wpk.at[lay["o_wih1"]:lay["o_wih1"] + hidden_size, :].set(wih1.T)
    wpk = wpk.at[lay["o_whh1"]:lay["o_whh1"] + hidden_size, :].set(whh1.T)
    wpk = wpk.at[lay["o_b0"], :].set(bih0 + bhh0)
    wpk = wpk.at[lay["o_b1"], :].set(bih1 + bhh1)
    wpk = wpk.at[lay["o_bfc"], :num_classes].set(bfc)

    # FC weight grouped per timestep (t-major, matching out.reshape(B, -1)),
    # pre-cast to bf16 once.
    wfc_pk = wfc.T.reshape(seq_len, hidden_size, num_classes).astype(jnp.bfloat16)

    return {
        # Kernel operands (packed, one-time prep):
        "wpk": wpk,                            # (rows, H) f32
        "wfc_pk": wfc_pk,                      # (T, H, C) bf16
        # Raw f32 params for the pure-JAX reference:
        "wih0_t": wih0.T,                      # (I, H)
        "whh0_t": whh0.T,                      # (H, H)
        "b0": (bih0 + bhh0)[None, :],          # (1, H)
        "wih1_t": wih1.T,                      # (H, H)
        "whh1_t": whh1.T,                      # (H, H)
        "b1": (bih1 + bhh1)[None, :],          # (1, H)
        "wfc_t": wfc.T,                        # (T*H, C)
        "bfc": bfc[None, :],                   # (1, C)
    }


# Pure-JAX f32 reference for verification.
def rnn_reference(x, p):
    B, T, I = x.shape
    H = p["whh0_t"].shape[0]

    def step(carry, xt):
        h1, h2 = carry
        h1n = jnp.tanh(xt @ p["wih0_t"] + h1 @ p["whh0_t"] + p["b0"][0])
        h2n = jnp.tanh(h1n @ p["wih1_t"] + h2 @ p["whh1_t"] + p["b1"][0])
        return (h1n, h2n), h2n

    xs = jnp.transpose(x, (1, 0, 2))
    _, outs = jax.lax.scan(step, (jnp.zeros((B, H)), jnp.zeros((B, H))), xs)
    flat = jnp.transpose(outs, (1, 0, 2)).reshape(B, T * H)
    return flat @ p["wfc_t"] + p["bfc"][0]


if __name__ == "__main__":
    key = jax.random.PRNGKey(0)
    k_x, k_p = jax.random.split(key)

    x = jax.random.normal(k_x, (BATCH, SEQ_LEN, INPUT_SIZE), jnp.float32)
    params = init_params(k_p, INPUT_SIZE, HIDDEN_SIZE, SEQ_LEN, NUM_CLASSES)

    logits = rnn_forward(x, params["wpk"], params["wfc_pk"])
    jax.block_until_ready(logits)

    ref = rnn_reference(x, params)
    # bf16 MXU operands (f32 accumulation) shift results ~1e-3 vs the pure-f32
    # reference; 2e-2 tolerance is comfortably above that, far below signal.
    np.testing.assert_allclose(np.asarray(logits), np.asarray(ref),
                               rtol=2e-2, atol=2e-2)
    print("KERNEL_OK")
</pallas_src>

<mosaic_0001>
module attributes {stable_mosaic.version = 11 : i64} {
  func.func @fused_rnn_fc_kernel(%arg0: memref<4x8x8xf32, #tpu.memory_space<vmem>>, %arg1: memref<128x32xf32, #tpu.memory_space<vmem>>, %arg2: memref<8x32x10xbf16, #tpu.memory_space<vmem>>, %arg3: memref<4x10xf32, #tpu.memory_space<vmem>>) attributes {dimension_semantics = [], scalar_prefetch = 0 : i64, scratch_operands = 0 : i64, tpu.core_type = #tpu.core_type<tc>} {
    %c0 = arith.constant 0 : index
    %c0_0 = arith.constant 0 : index
    %0 = vector.load %arg1[%c0, %c0_0] : memref<128x32xf32, #tpu.memory_space<vmem>>, vector<8x32xf32>
    %1 = arith.truncf %0 : vector<8x32xf32> to vector<8x32xbf16>
    %c8 = arith.constant 8 : index
    %c0_1 = arith.constant 0 : index
    %2 = vector.load %arg1[%c8, %c0_1] : memref<128x32xf32, #tpu.memory_space<vmem>>, vector<32x32xf32>
    %3 = arith.truncf %2 : vector<32x32xf32> to vector<32x32xbf16>
    %c40 = arith.constant 40 : index
    %c0_2 = arith.constant 0 : index
    %4 = vector.load %arg1[%c40, %c0_2] : memref<128x32xf32, #tpu.memory_space<vmem>>, vector<32x32xf32>
    %5 = arith.truncf %4 : vector<32x32xf32> to vector<32x32xbf16>
    %c72 = arith.constant 72 : index
    %c0_3 = arith.constant 0 : index
    %6 = vector.load %arg1[%c72, %c0_3] : memref<128x32xf32, #tpu.memory_space<vmem>>, vector<32x32xf32>
    %7 = arith.truncf %6 : vector<32x32xf32> to vector<32x32xbf16>
    %c104 = arith.constant 104 : index
    %c0_4 = arith.constant 0 : index
    %8 = vector.load %arg1[%c104, %c0_4] : memref<128x32xf32, #tpu.memory_space<vmem>>, vector<1x32xf32>
    %c112 = arith.constant 112 : index
    %c0_5 = arith.constant 0 : index
    %9 = vector.load %arg1[%c112, %c0_5] : memref<128x32xf32, #tpu.memory_space<vmem>>, vector<1x32xf32>
    %c120 = arith.constant 120 : index
    %c0_6 = arith.constant 0 : index
    %10 = vector.load %arg1[%c120, %c0_6] : memref<128x32xf32, #tpu.memory_space<vmem>>, vector<1x10xf32>
    %c0_7 = arith.constant 0 : index
    %c0_8 = arith.constant 0 : index
    %c0_9 = arith.constant 0 : index
    %11 = vector.load %arg0[%c0_7, %c0_8, %c0_9] : memref<4x8x8xf32, #tpu.memory_space<vmem>>, vector<4x8x8xf32>
    %12 = vector.extract_strided_slice %11 {offsets = [0, 0, 0], sizes = [4, 1, 8], strides = [1, 1, 1]} : vector<4x8x8xf32> to vector<4x1x8xf32>
    %13 = vector.shape_cast %12 : vector<4x1x8xf32> to vector<4x8xf32>
    %14 = arith.truncf %13 : vector<4x8xf32> to vector<4x8xbf16>
    %cst = arith.constant dense<0.000000e+00> : vector<4x32xf32>
    %15 = tpu.matmul %14, %1, %cst {dimension_numbers = #tpu.dot_dimension_numbers<[1], [0], [0], [1], [0, 0, 1, 1], [], []>} : vector<4x8xbf16>, vector<8x32xbf16>, vector<4x32xf32> -> vector<4x32xf32>
    %16 = vector.broadcast %8 : vector<1x32xf32> to vector<4x32xf32>
    %17 = arith.addf %15, %16 : vector<4x32xf32>
    %18 = vector.extract_strided_slice %11 {offsets = [0, 1, 0], sizes = [4, 1, 8], strides = [1, 1, 1]} : vector<4x8x8xf32> to vector<4x1x8xf32>
    %19 = vector.shape_cast %18 : vector<4x1x8xf32> to vector<4x8xf32>
    %20 = arith.truncf %19 : vector<4x8xf32> to vector<4x8xbf16>
    %cst_10 = arith.constant dense<0.000000e+00> : vector<4x32xf32>
    %21 = tpu.matmul %20, %1, %cst_10 {dimension_numbers = #tpu.dot_dimension_numbers<[1], [0], [0], [1], [0, 0, 1, 1], [], []>} : vector<4x8xbf16>, vector<8x32xbf16>, vector<4x32xf32> -> vector<4x32xf32>
    %22 = vector.broadcast %8 : vector<1x32xf32> to vector<4x32xf32>
    %23 = arith.addf %21, %22 : vector<4x32xf32>
    %24 = vector.extract_strided_slice %11 {offsets = [0, 2, 0], sizes = [4, 1, 8], strides = [1, 1, 1]} : vector<4x8x8xf32> to vector<4x1x8xf32>
    %25 = vector.shape_cast %24 : vector<4x1x8xf32> to vector<4x8xf32>
    %26 = arith.truncf %25 : vector<4x8xf32> to vector<4x8xbf16>
    %cst_11 = arith.constant dense<0.000000e+00> : vector<4x32xf32>
    %27 = tpu.matmul %26, %1, %cst_11 {dimension_numbers = #tpu.dot_dimension_numbers<[1], [0], [0], [1], [0, 0, 1, 1], [], []>} : vector<4x8xbf16>, vector<8x32xbf16>, vector<4x32xf32> -> vector<4x32xf32>
    %28 = vector.broadcast %8 : vector<1x32xf32> to vector<4x32xf32>
    %29 = arith.addf %27, %28 : vector<4x32xf32>
    %30 = vector.extract_strided_slice %11 {offsets = [0, 3, 0], sizes = [4, 1, 8], strides = [1, 1, 1]} : vector<4x8x8xf32> to vector<4x1x8xf32>
    %31 = vector.shape_cast %30 : vector<4x1x8xf32> to vector<4x8xf32>
    %32 = arith.truncf %31 : vector<4x8xf32> to vector<4x8xbf16>
    %cst_12 = arith.constant dense<0.000000e+00> : vector<4x32xf32>
    %33 = tpu.matmul %32, %1, %cst_12 {dimension_numbers = #tpu.dot_dimension_numbers<[1], [0], [0], [1], [0, 0, 1, 1], [], []>} : vector<4x8xbf16>, vector<8x32xbf16>, vector<4x32xf32> -> vector<4x32xf32>
    %34 = vector.broadcast %8 : vector<1x32xf32> to vector<4x32xf32>
    %35 = arith.addf %33, %34 : vector<4x32xf32>
    %36 = vector.extract_strided_slice %11 {offsets = [0, 4, 0], sizes = [4, 1, 8], strides = [1, 1, 1]} : vector<4x8x8xf32> to vector<4x1x8xf32>
    %37 = vector.shape_cast %36 : vector<4x1x8xf32> to vector<4x8xf32>
    %38 = arith.truncf %37 : vector<4x8xf32> to vector<4x8xbf16>
    %cst_13 = arith.constant dense<0.000000e+00> : vector<4x32xf32>
    %39 = tpu.matmul %38, %1, %cst_13 {dimension_numbers = #tpu.dot_dimension_numbers<[1], [0], [0], [1], [0, 0, 1, 1], [], []>} : vector<4x8xbf16>, vector<8x32xbf16>, vector<4x32xf32> -> vector<4x32xf32>
    %40 = vector.broadcast %8 : vector<1x32xf32> to vector<4x32xf32>
    %41 = arith.addf %39, %40 : vector<4x32xf32>
    %42 = vector.extract_strided_slice %11 {offsets = [0, 5, 0], sizes = [4, 1, 8], strides = [1, 1, 1]} : vector<4x8x8xf32> to vector<4x1x8xf32>
    %43 = vector.shape_cast %42 : vector<4x1x8xf32> to vector<4x8xf32>
    %44 = arith.truncf %43 : vector<4x8xf32> to vector<4x8xbf16>
    %cst_14 = arith.constant dense<0.000000e+00> : vector<4x32xf32>
    %45 = tpu.matmul %44, %1, %cst_14 {dimension_numbers = #tpu.dot_dimension_numbers<[1], [0], [0], [1], [0, 0, 1, 1], [], []>} : vector<4x8xbf16>, vector<8x32xbf16>, vector<4x32xf32> -> vector<4x32xf32>
    %46 = vector.broadcast %8 : vector<1x32xf32> to vector<4x32xf32>
    %47 = arith.addf %45, %46 : vector<4x32xf32>
    %48 = vector.extract_strided_slice %11 {offsets = [0, 6, 0], sizes = [4, 1, 8], strides = [1, 1, 1]} : vector<4x8x8xf32> to vector<4x1x8xf32>
    %49 = vector.shape_cast %48 : vector<4x1x8xf32> to vector<4x8xf32>
    %50 = arith.truncf %49 : vector<4x8xf32> to vector<4x8xbf16>
    %cst_15 = arith.constant dense<0.000000e+00> : vector<4x32xf32>
    %51 = tpu.matmul %50, %1, %cst_15 {dimension_numbers = #tpu.dot_dimension_numbers<[1], [0], [0], [1], [0, 0, 1, 1], [], []>} : vector<4x8xbf16>, vector<8x32xbf16>, vector<4x32xf32> -> vector<4x32xf32>
    %52 = vector.broadcast %8 : vector<1x32xf32> to vector<4x32xf32>
    %53 = arith.addf %51, %52 : vector<4x32xf32>
    %54 = vector.extract_strided_slice %11 {offsets = [0, 7, 0], sizes = [4, 1, 8], strides = [1, 1, 1]} : vector<4x8x8xf32> to vector<4x1x8xf32>
    %55 = vector.shape_cast %54 : vector<4x1x8xf32> to vector<4x8xf32>
    %56 = arith.truncf %55 : vector<4x8xf32> to vector<4x8xbf16>
    %cst_16 = arith.constant dense<0.000000e+00> : vector<4x32xf32>
    %57 = tpu.matmul %56, %1, %cst_16 {dimension_numbers = #tpu.dot_dimension_numbers<[1], [0], [0], [1], [0, 0, 1, 1], [], []>} : vector<4x8xbf16>, vector<8x32xbf16>, vector<4x32xf32> -> vector<4x32xf32>
    %58 = vector.broadcast %8 : vector<1x32xf32> to vector<4x32xf32>
    %59 = arith.addf %57, %58 : vector<4x32xf32>
    %cst_17 = arith.constant 0.000000e+00 : f32
    %60 = vector.broadcast %cst_17 : f32 to vector<4x32xf32>
    %cst_18 = arith.constant 0.000000e+00 : f32
    %61 = vector.broadcast %cst_18 : f32 to vector<4x32xf32>
    %62 = arith.truncf %60 : vector<4x32xf32> to vector<4x32xbf16>
    %cst_19 = arith.constant dense<0.000000e+00> : vector<4x32xf32>
    %63 = tpu.matmul %62, %3, %cst_19 {dimension_numbers = #tpu.dot_dimension_numbers<[1], [0], [0], [1], [0, 0, 1, 1], [], []>} : vector<4x32xbf16>, vector<32x32xbf16>, vector<4x32xf32> -> vector<4x32xf32>
    %64 = arith.addf %17, %63 : vector<4x32xf32>
    %65 = math.tanh %64 : vector<4x32xf32>
    %66 = arith.truncf %65 : vector<4x32xf32> to vector<4x32xbf16>
    %cst_20 = arith.constant dense<0.000000e+00> : vector<4x32xf32>
    %67 = tpu.matmul %66, %5, %cst_20 {dimension_numbers = #tpu.dot_dimension_numbers<[1], [0], [0], [1], [0, 0, 1, 1], [], []>} : vector<4x32xbf16>, vector<32x32xbf16>, vector<4x32xf32> -> vector<4x32xf32>
    %68 = arith.truncf %61 : vector<4x32xf32> to vector<4x32xbf16>
    %cst_21 = arith.constant dense<0.000000e+00> : vector<4x32xf32>
    %69 = tpu.matmul %68, %7, %cst_21 {dimension_numbers = #tpu.dot_dimension_numbers<[1], [0], [0], [1], [0, 0, 1, 1], [], []>} : vector<4x32xbf16>, vector<32x32xbf16>, vector<4x32xf32> -> vector<4x32xf32>
    %70 = arith.addf %67, %69 : vector<4x32xf32>
    %71 = vector.broadcast %9 : vector<1x32xf32> to vector<4x32xf32>
    %72 = arith.addf %70, %71 : vector<4x32xf32>
    %73 = math.tanh %72 : vector<4x32xf32>
    %74 = arith.truncf %73 : vector<4x32xf32> to vector<4x32xbf16>
    %75 = arith.truncf %65 : vector<4x32xf32> to vector<4x32xbf16>
    %cst_22 = arith.constant dense<0.000000e+00> : vector<4x32xf32>
    %76 = tpu.matmul %75, %3, %cst_22 {dimension_numbers = #tpu.dot_dimension_numbers<[1], [0], [0], [1], [0, 0, 1, 1], [], []>} : vector<4x32xbf16>, vector<32x32xbf16>, vector<4x32xf32> -> vector<4x32xf32>
    %77 = arith.addf %23, %76 : vector<4x32xf32>
    %78 = math.tanh %77 : vector<4x32xf32>
    %79 = arith.truncf %78 : vector<4x32xf32> to vector<4x32xbf16>
    %cst_23 = arith.constant dense<0.000000e+00> : vector<4x32xf32>
    %80 = tpu.matmul %79, %5, %cst_23 {dimension_numbers = #tpu.dot_dimension_numbers<[1], [0], [0], [1], [0, 0, 1, 1], [], []>} : vector<4x32xbf16>, vector<32x32xbf16>, vector<4x32xf32> -> vector<4x32xf32>
    %81 = arith.truncf %73 : vector<4x32xf32> to vector<4x32xbf16>
    %cst_24 = arith.constant dense<0.000000e+00> : vector<4x32xf32>
    %82 = tpu.matmul %81, %7, %cst_24 {dimension_numbers = #tpu.dot_dimension_numbers<[1], [0], [0], [1], [0, 0, 1, 1], [], []>} : vector<4x32xbf16>, vector<32x32xbf16>, vector<4x32xf32> -> vector<4x32xf32>
    %83 = arith.addf %80, %82 : vector<4x32xf32>
    %84 = vector.broadcast %9 : vector<1x32xf32> to vector<4x32xf32>
    %85 = arith.addf %83, %84 : vector<4x32xf32>
    %86 = math.tanh %85 : vector<4x32xf32>
    %87 = arith.truncf %86 : vector<4x32xf32> to vector<4x32xbf16>
    %88 = arith.truncf %78 : vector<4x32xf32> to vector<4x32xbf16>
    %cst_25 = arith.constant dense<0.000000e+00> : vector<4x32xf32>
    %89 = tpu.matmul %88, %3, %cst_25 {dimension_numbers = #tpu.dot_dimension_numbers<[1], [0], [0], [1], [0, 0, 1, 1], [], []>} : vector<4x32xbf16>, vector<32x32xbf16>, vector<4x32xf32> -> vector<4x32xf32>
    %90 = arith.addf %29, %89 : vector<4x32xf32>
    %91 = math.tanh %90 : vector<4x32xf32>
    %92 = arith.truncf %91 : vector<4x32xf32> to vector<4x32xbf16>
    %cst_26 = arith.constant dense<0.000000e+00> : vector<4x32xf32>
    %93 = tpu.matmul %92, %5, %cst_26 {dimension_numbers = #tpu.dot_dimension_numbers<[1], [0], [0], [1], [0, 0, 1, 1], [], []>} : vector<4x32xbf16>, vector<32x32xbf16>, vector<4x32xf32> -> vector<4x32xf32>
    %94 = arith.truncf %86 : vector<4x32xf32> to vector<4x32xbf16>
    %cst_27 = arith.constant dense<0.000000e+00> : vector<4x32xf32>
    %95 = tpu.matmul %94, %7, %cst_27 {dimension_numbers = #tpu.dot_dimension_numbers<[1], [0], [0], [1], [0, 0, 1, 1], [], []>} : vector<4x32xbf16>, vector<32x32xbf16>, vector<4x32xf32> -> vector<4x32xf32>
    %96 = arith.addf %93, %95 : vector<4x32xf32>
    %97 = vector.broadcast %9 : vector<1x32xf32> to vector<4x32xf32>
    %98 = arith.addf %96, %97 : vector<4x32xf32>
    %99 = math.tanh %98 : vector<4x32xf32>
    %100 = arith.truncf %99 : vector<4x32xf32> to vector<4x32xbf16>
    %101 = arith.truncf %91 : vector<4x32xf32> to vector<4x32xbf16>
    %cst_28 = arith.constant dense<0.000000e+00> : vector<4x32xf32>
    %102 = tpu.matmul %101, %3, %cst_28 {dimension_numbers = #tpu.dot_dimension_numbers<[1], [0], [0], [1], [0, 0, 1, 1], [], []>} : vector<4x32xbf16>, vector<32x32xbf16>, vector<4x32xf32> -> vector<4x32xf32>
    %103 = arith.addf %35, %102 : vector<4x32xf32>
    %104 = math.tanh %103 : vector<4x32xf32>
    %105 = arith.truncf %104 : vector<4x32xf32> to vector<4x32xbf16>
    %cst_29 = arith.constant dense<0.000000e+00> : vector<4x32xf32>
    %106 = tpu.matmul %105, %5, %cst_29 {dimension_numbers = #tpu.dot_dimension_numbers<[1], [0], [0], [1], [0, 0, 1, 1], [], []>} : vector<4x32xbf16>, vector<32x32xbf16>, vector<4x32xf32> -> vector<4x32xf32>
    %107 = arith.truncf %99 : vector<4x32xf32> to vector<4x32xbf16>
    %cst_30 = arith.constant dense<0.000000e+00> : vector<4x32xf32>
    %108 = tpu.matmul %107, %7, %cst_30 {dimension_numbers = #tpu.dot_dimension_numbers<[1], [0], [0], [1], [0, 0, 1, 1], [], []>} : vector<4x32xbf16>, vector<32x32xbf16>, vector<4x32xf32> -> vector<4x32xf32>
    %109 = arith.addf %106, %108 : vector<4x32xf32>
    %110 = vector.broadcast %9 : vector<1x32xf32> to vector<4x32xf32>
    %111 = arith.addf %109, %110 : vector<4x32xf32>
    %112 = math.tanh %111 : vector<4x32xf32>
    %113 = arith.truncf %112 : vector<4x32xf32> to vector<4x32xbf16>
    %114 = arith.truncf %104 : vector<4x32xf32> to vector<4x32xbf16>
    %cst_31 = arith.constant dense<0.000000e+00> : vector<4x32xf32>
    %115 = tpu.matmul %114, %3, %cst_31 {dimension_numbers = #tpu.dot_dimension_numbers<[1], [0], [0], [1], [0, 0, 1, 1], [], []>} : vector<4x32xbf16>, vector<32x32xbf16>, vector<4x32xf32> -> vector<4x32xf32>
    %116 = arith.addf %41, %115 : vector<4x32xf32>
    %117 = math.tanh %116 : vector<4x32xf32>
    %118 = arith.truncf %117 : vector<4x32xf32> to vector<4x32xbf16>
    %cst_32 = arith.constant dense<0.000000e+00> : vector<4x32xf32>
    %119 = tpu.matmul %118, %5, %cst_32 {dimension_numbers = #tpu.dot_dimension_numbers<[1], [0], [0], [1], [0, 0, 1, 1], [], []>} : vector<4x32xbf16>, vector<32x32xbf16>, vector<4x32xf32> -> vector<4x32xf32>
    %120 = arith.truncf %112 : vector<4x32xf32> to vector<4x32xbf16>
    %cst_33 = arith.constant dense<0.000000e+00> : vector<4x32xf32>
    %121 = tpu.matmul %120, %7, %cst_33 {dimension_numbers = #tpu.dot_dimension_numbers<[1], [0], [0], [1], [0, 0, 1, 1], [], []>} : vector<4x32xbf16>, vector<32x32xbf16>, vector<4x32xf32> -> vector<4x32xf32>
    %122 = arith.addf %119, %121 : vector<4x32xf32>
    %123 = vector.broadcast %9 : vector<1x32xf32> to vector<4x32xf32>
    %124 = arith.addf %122, %123 : vector<4x32xf32>
    %125 = math.tanh %124 : vector<4x32xf32>
    %126 = arith.truncf %125 : vector<4x32xf32> to vector<4x32xbf16>
    %127 = arith.truncf %117 : vector<4x32xf32> to vector<4x32xbf16>
    %cst_34 = arith.constant dense<0.000000e+00> : vector<4x32xf32>
    %128 = tpu.matmul %127, %3, %cst_34 {dimension_numbers = #tpu.dot_dimension_numbers<[1], [0], [0], [1], [0, 0, 1, 1], [], []>} : vector<4x32xbf16>, vector<32x32xbf16>, vector<4x32xf32> -> vector<4x32xf32>
    %129 = arith.addf %47, %128 : vector<4x32xf32>
    %130 = math.tanh %129 : vector<4x32xf32>
    %131 = arith.truncf %130 : vector<4x32xf32> to vector<4x32xbf16>
    %cst_35 = arith.constant dense<0.000000e+00> : vector<4x32xf32>
    %132 = tpu.matmul %131, %5, %cst_35 {dimension_numbers = #tpu.dot_dimension_numbers<[1], [0], [0], [1], [0, 0, 1, 1], [], []>} : vector<4x32xbf16>, vector<32x32xbf16>, vector<4x32xf32> -> vector<4x32xf32>
    %133 = arith.truncf %125 : vector<4x32xf32> to vector<4x32xbf16>
    %cst_36 = arith.constant dense<0.000000e+00> : vector<4x32xf32>
    %134 = tpu.matmul %133, %7, %cst_36 {dimension_numbers = #tpu.dot_dimension_numbers<[1], [0], [0], [1], [0, 0, 1, 1], [], []>} : vector<4x32xbf16>, vector<32x32xbf16>, vector<4x32xf32> -> vector<4x32xf32>
    %135 = arith.addf %132, %134 : vector<4x32xf32>
    %136 = vector.broadcast %9 : vector<1x32xf32> to vector<4x32xf32>
    %137 = arith.addf %135, %136 : vector<4x32xf32>
    %138 = math.tanh %137 : vector<4x32xf32>
    %139 = arith.truncf %138 : vector<4x32xf32> to vector<4x32xbf16>
    %140 = arith.truncf %130 : vector<4x32xf32> to vector<4x32xbf16>
    %cst_37 = arith.constant dense<0.000000e+00> : vector<4x32xf32>
    %141 = tpu.matmul %140, %3, %cst_37 {dimension_numbers = #tpu.dot_dimension_numbers<[1], [0], [0], [1], [0, 0, 1, 1], [], []>} : vector<4x32xbf16>, vector<32x32xbf16>, vector<4x32xf32> -> vector<4x32xf32>
    %142 = arith.addf %53, %141 : vector<4x32xf32>
    %143 = math.tanh %142 : vector<4x32xf32>
    %144 = arith.truncf %143 : vector<4x32xf32> to vector<4x32xbf16>
    %cst_38 = arith.constant dense<0.000000e+00> : vector<4x32xf32>
    %145 = tpu.matmul %144, %5, %cst_38 {dimension_numbers = #tpu.dot_dimension_numbers<[1], [0], [0], [1], [0, 0, 1, 1], [], []>} : vector<4x32xbf16>, vector<32x32xbf16>, vector<4x32xf32> -> vector<4x32xf32>
    %146 = arith.truncf %138 : vector<4x32xf32> to vector<4x32xbf16>
    %cst_39 = arith.constant dense<0.000000e+00> : vector<4x32xf32>
    %147 = tpu.matmul %146, %7, %cst_39 {dimension_numbers = #tpu.dot_dimension_numbers<[1], [0], [0], [1], [0, 0, 1, 1], [], []>} : vector<4x32xbf16>, vector<32x32xbf16>, vector<4x32xf32> -> vector<4x32xf32>
    %148 = arith.addf %145, %147 : vector<4x32xf32>
    %149 = vector.broadcast %9 : vector<1x32xf32> to vector<4x32xf32>
    %150 = arith.addf %148, %149 : vector<4x32xf32>
    %151 = math.tanh %150 : vector<4x32xf32>
    %152 = arith.truncf %151 : vector<4x32xf32> to vector<4x32xbf16>
    %153 = arith.truncf %143 : vector<4x32xf32> to vector<4x32xbf16>
    %cst_40 = arith.constant dense<0.000000e+00> : vector<4x32xf32>
    %154 = tpu.matmul %153, %3, %cst_40 {dimension_numbers = #tpu.dot_dimension_numbers<[1], [0], [0], [1], [0, 0, 1, 1], [], []>} : vector<4x32xbf16>, vector<32x32xbf16>, vector<4x32xf32> -> vector<4x32xf32>
    %155 = arith.addf %59, %154 : vector<4x32xf32>
    %156 = math.tanh %155 : vector<4x32xf32>
    %157 = arith.truncf %156 : vector<4x32xf32> to vector<4x32xbf16>
    %cst_41 = arith.constant dense<0.000000e+00> : vector<4x32xf32>
    %158 = tpu.matmul %157, %5, %cst_41 {dimension_numbers = #tpu.dot_dimension_numbers<[1], [0], [0], [1], [0, 0, 1, 1], [], []>} : vector<4x32xbf16>, vector<32x32xbf16>, vector<4x32xf32> -> vector<4x32xf32>
    %159 = arith.truncf %151 : vector<4x32xf32> to vector<4x32xbf16>
    %cst_42 = arith.constant dense<0.000000e+00> : vector<4x32xf32>
    %160 = tpu.matmul %159, %7, %cst_42 {dimension_numbers = #tpu.dot_dimension_numbers<[1], [0], [0], [1], [0, 0, 1, 1], [], []>} : vector<4x32xbf16>, vector<32x32xbf16>, vector<4x32xf32> -> vector<4x32xf32>
    %161 = arith.addf %158, %160 : vector<4x32xf32>
    %162 = vector.broadcast %9 : vector<1x32xf32> to vector<4x32xf32>
    %163 = arith.addf %161, %162 : vector<4x32xf32>
    %164 = math.tanh %163 : vector<4x32xf32>
    %165 = arith.truncf %164 : vector<4x32xf32> to vector<4x32xbf16>
    %cst_43 = arith.constant 0.000000e+00 : f32
    %166 = vector.broadcast %cst_43 : f32 to vector<4x10xf32>
    %167 = vector.broadcast %10 : vector<1x10xf32> to vector<4x10xf32>
    %168 = arith.addf %166, %167 : vector<4x10xf32>
    %c0_44 = arith.constant 0 : index
    %c0_45 = arith.constant 0 : index
    %c0_46 = arith.constant 0 : index
    %169 = vector.load %arg2[%c0_44, %c0_45, %c0_46] : memref<8x32x10xbf16, #tpu.memory_space<vmem>>, vector<1x32x10xbf16>
    %170 = vector.shape_cast %169 : vector<1x32x10xbf16> to vector<32x10xbf16>
    %cst_47 = arith.constant dense<0.000000e+00> : vector<4x10xf32>
    %171 = tpu.matmul %74, %170, %cst_47 {dimension_numbers = #tpu.dot_dimension_numbers<[1], [0], [0], [1], [0, 0, 1, 1], [], []>} : vector<4x32xbf16>, vector<32x10xbf16>, vector<4x10xf32> -> vector<4x10xf32>
    %172 = arith.addf %168, %171 : vector<4x10xf32>
    %c1 = arith.constant 1 : index
    %c0_48 = arith.constant 0 : index
    %c0_49 = arith.constant 0 : index
    %173 = vector.load %arg2[%c1, %c0_48, %c0_49] : memref<8x32x10xbf16, #tpu.memory_space<vmem>>, vector<1x32x10xbf16>
    %174 = vector.shape_cast %173 : vector<1x32x10xbf16> to vector<32x10xbf16>
    %cst_50 = arith.constant dense<0.000000e+00> : vector<4x10xf32>
    %175 = tpu.matmul %87, %174, %cst_50 {dimension_numbers = #tpu.dot_dimension_numbers<[1], [0], [0], [1], [0, 0, 1, 1], [], []>} : vector<4x32xbf16>, vector<32x10xbf16>, vector<4x10xf32> -> vector<4x10xf32>
    %176 = arith.addf %172, %175 : vector<4x10xf32>
    %c2 = arith.constant 2 : index
    %c0_51 = arith.constant 0 : index
    %c0_52 = arith.constant 0 : index
    %177 = vector.load %arg2[%c2, %c0_51, %c0_52] : memref<8x32x10xbf16, #tpu.memory_space<vmem>>, vector<1x32x10xbf16>
    %178 = vector.shape_cast %177 : vector<1x32x10xbf16> to vector<32x10xbf16>
    %cst_53 = arith.constant dense<0.000000e+00> : vector<4x10xf32>
    %179 = tpu.matmul %100, %178, %cst_53 {dimension_numbers = #tpu.dot_dimension_numbers<[1], [0], [0], [1], [0, 0, 1, 1], [], []>} : vector<4x32xbf16>, vector<32x10xbf16>, vector<4x10xf32> -> vector<4x10xf32>
    %180 = arith.addf %176, %179 : vector<4x10xf32>
    %c3 = arith.constant 3 : index
    %c0_54 = arith.constant 0 : index
    %c0_55 = arith.constant 0 : index
    %181 = vector.load %arg2[%c3, %c0_54, %c0_55] : memref<8x32x10xbf16, #tpu.memory_space<vmem>>, vector<1x32x10xbf16>
    %182 = vector.shape_cast %181 : vector<1x32x10xbf16> to vector<32x10xbf16>
    %cst_56 = arith.constant dense<0.000000e+00> : vector<4x10xf32>
    %183 = tpu.matmul %113, %182, %cst_56 {dimension_numbers = #tpu.dot_dimension_numbers<[1], [0], [0], [1], [0, 0, 1, 1], [], []>} : vector<4x32xbf16>, vector<32x10xbf16>, vector<4x10xf32> -> vector<4x10xf32>
    %184 = arith.addf %180, %183 : vector<4x10xf32>
    %c4 = arith.constant 4 : index
    %c0_57 = arith.constant 0 : index
    %c0_58 = arith.constant 0 : index
    %185 = vector.load %arg2[%c4, %c0_57, %c0_58] : memref<8x32x10xbf16, #tpu.memory_space<vmem>>, vector<1x32x10xbf16>
    %186 = vector.shape_cast %185 : vector<1x32x10xbf16> to vector<32x10xbf16>
    %cst_59 = arith.constant dense<0.000000e+00> : vector<4x10xf32>
    %187 = tpu.matmul %126, %186, %cst_59 {dimension_numbers = #tpu.dot_dimension_numbers<[1], [0], [0], [1], [0, 0, 1, 1], [], []>} : vector<4x32xbf16>, vector<32x10xbf16>, vector<4x10xf32> -> vector<4x10xf32>
    %188 = arith.addf %184, %187 : vector<4x10xf32>
    %c5 = arith.constant 5 : index
    %c0_60 = arith.constant 0 : index
    %c0_61 = arith.constant 0 : index
    %189 = vector.load %arg2[%c5, %c0_60, %c0_61] : memref<8x32x10xbf16, #tpu.memory_space<vmem>>, vector<1x32x10xbf16>
    %190 = vector.shape_cast %189 : vector<1x32x10xbf16> to vector<32x10xbf16>
    %cst_62 = arith.constant dense<0.000000e+00> : vector<4x10xf32>
    %191 = tpu.matmul %139, %190, %cst_62 {dimension_numbers = #tpu.dot_dimension_numbers<[1], [0], [0], [1], [0, 0, 1, 1], [], []>} : vector<4x32xbf16>, vector<32x10xbf16>, vector<4x10xf32> -> vector<4x10xf32>
    %192 = arith.addf %188, %191 : vector<4x10xf32>
    %c6 = arith.constant 6 : index
    %c0_63 = arith.constant 0 : index
    %c0_64 = arith.constant 0 : index
    %193 = vector.load %arg2[%c6, %c0_63, %c0_64] : memref<8x32x10xbf16, #tpu.memory_space<vmem>>, vector<1x32x10xbf16>
    %194 = vector.shape_cast %193 : vector<1x32x10xbf16> to vector<32x10xbf16>
    %cst_65 = arith.constant dense<0.000000e+00> : vector<4x10xf32>
    %195 = tpu.matmul %152, %194, %cst_65 {dimension_numbers = #tpu.dot_dimension_numbers<[1], [0], [0], [1], [0, 0, 1, 1], [], []>} : vector<4x32xbf16>, vector<32x10xbf16>, vector<4x10xf32> -> vector<4x10xf32>
    %196 = arith.addf %192, %195 : vector<4x10xf32>
    %c7 = arith.constant 7 : index
    %c0_66 = arith.constant 0 : index
    %c0_67 = arith.constant 0 : index
    %197 = vector.load %arg2[%c7, %c0_66, %c0_67] : memref<8x32x10xbf16, #tpu.memory_space<vmem>>, vector<1x32x10xbf16>
    %198 = vector.shape_cast %197 : vector<1x32x10xbf16> to vector<32x10xbf16>
    %cst_68 = arith.constant dense<0.000000e+00> : vector<4x10xf32>
    %199 = tpu.matmul %165, %198, %cst_68 {dimension_numbers = #tpu.dot_dimension_numbers<[1], [0], [0], [1], [0, 0, 1, 1], [], []>} : vector<4x32xbf16>, vector<32x10xbf16>, vector<4x10xf32> -> vector<4x10xf32>
    %200 = arith.addf %196, %199 : vector<4x10xf32>
    %c0_69 = arith.constant 0 : index
    %c0_70 = arith.constant 0 : index
    %201 = vector.load %arg3[%c0_69, %c0_70] : memref<4x10xf32, #tpu.memory_space<vmem>>, vector<4x10xf32>
    tpu.vector_store %arg3[%c0_69, %c0_70], %200 {strides = array<i32>} : memref<4x10xf32, #tpu.memory_space<vmem>>, vector<4x10xf32>,
    return
  }
}

</mosaic_0001>

<llo_original>
// kernel: rnn_forward.1
$region0: #{rnn_forward.1}
  #allocation0 [shape = 'u32[]', space=smem, size = 0x4, offset = 0x4, fixed_abs, tag = 'smem constant byte address 0x4 - core index']
  #allocation1 [shape = 'u32[72,128]{1,0:T(1,128)}', space=vmem, size = 0x9000, scoped, tag = 'internal scratch']
  %s0 = inlined_call_operand.vmem [shape: f32[4,8,8], index: 0, kind: input, shape index: {}]
  %s1 = inlined_call_operand.vmem [shape: f32[128,32], index: 1, kind: input, shape index: {}]
  %s2 = inlined_call_operand.vmem [shape: bf16[8,32,10], index: 2, kind: input, shape index: {}]
  %s3 = inlined_call_operand.hbm [shape: f32[4,10], index: 3, kind: output, shape index: {}]
  %s4 = sld [smem:[#allocation0]]
  $region22: #{rnn_forward.1} parent=0
    _
  %s6 = ssub.s32 1, %s4
  %s7 = scalar_select 0, %s6, %s4
  $region1: #{rnn_forward.1} parent=0
    #allocation2 [shape = 'u8[2048]{0}', space=vmem, size = 0x800, scoped, tag = 'output window, operand 0, single buffered']
    #allocation3 [shape = 's32[1]{0}', space=sflag, size = 0x4, scoped, tag = 'scoped memory for rnn_forward.1']
    %8 = vsyncpa [#allocation3], 0
    // Predicated region
    $region2: #{rnn_forward.1} parent=1 // pred_check
      _
    $region3: #{rnn_forward.1} parent=1 // pred_check_branch
      %10 = sbr.rel (0) target = $region5
    $region4: #{rnn_forward.1} parent=1 // pred_region
      _
    $region5: #{rnn_forward.1} parent=1 // pred_fallthru
      _
    // Predicated region
    $region6: #{rnn_forward.1} parent=1 // pred_check
      _
    $region7: #{rnn_forward.1} parent=1 // pred_check_branch
      %12 = sbr.rel (0) target = $region9
    $region8: #{rnn_forward.1} parent=1 // pred_region
      _
    $region9: #{rnn_forward.1} parent=1 // pred_fallthru
      _
    // Predicated region
    $region10: #{rnn_forward.1} parent=1 // pred_check
      _
    $region11: #{rnn_forward.1} parent=1 // pred_check_branch
      %14 = sbr.rel (0) target = $region13
    $region12: #{rnn_forward.1} parent=1 // pred_region
      _
    $region13: #{rnn_forward.1} parent=1 // pred_fallthru
      _
    %v16 = vld [vmem:[%s1] sm:$0xff]
    %v17 = vpack.c.bf16 %v16, %v16
    %v18 = vld [vmem:[%s1 + $0x8] sm:$0xff]
    %v19 = vld [vmem:[%s1 + $0x10] sm:$0xff]
    %v20 = vld [vmem:[%s1 + $0x18] sm:$0xff]
    %v21 = vld [vmem:[%s1 + $0x20] sm:$0xff]
    %v22 = vpack.c.bf16 %v19, %v18
    %v23 = vpack.c.bf16 %v21, %v20
    %v24 = vld [vmem:[%s1 + $0x28] sm:$0xff]
    %v25 = vld [vmem:[%s1 + $0x30] sm:$0xff]
    %v26 = vld [vmem:[%s1 + $0x38] sm:$0xff]
    %v27 = vld [vmem:[%s1 + $0x40] sm:$0xff]
    %v28 = vpack.c.bf16 %v25, %v24
    %v29 = vpack.c.bf16 %v27, %v26
    %v30 = vld [vmem:[%s1 + $0x48] sm:$0xff]
    %v31 = vld [vmem:[%s1 + $0x50] sm:$0xff]
    %v32 = vld [vmem:[%s1 + $0x58] sm:$0xff]
    %v33 = vld [vmem:[%s1 + $0x60] sm:$0xff]
    %v34 = vpack.c.bf16 %v31, %v30
    %v35 = vpack.c.bf16 %v33, %v32
    %v36 = vld [vmem:[%s1 + $0x68] sm:$0x1]
    %v37 = vld [vmem:[%s1 + $0x70] sm:$0x1]
    %v38 = vld [vmem:[%s1 + $0x78] sm:$0x1]
    %v39 = vld [vmem:[%s0] sm:$0xff]
    %v40 = vld [vmem:[%s0 + $0x8] sm:$0xff]
    %v41 = vld [vmem:[%s0 + $0x10] sm:$0xff]
    %v42 = vld [vmem:[%s0 + $0x18] sm:$0xff]
    %v43 = vpack.c.bf16 %v39, %v39
    %v44 = vpack.c.bf16 %v40, %v40
    %v45 = vpack.c.bf16 %v41, %v41
    %v46 = vpack.c.bf16 %v42, %v42
    %v47 = vperm.slane %v36, 0
    %v52 = vunpack.c.l.b16 %v43
    %v53 = vunpack.c.l.b16 %v44
    %v54 = vunpack.c.l.b16 %v45
    %v55 = vunpack.c.l.b16 %v46
    %v56 = vrot.slane %v53, 7
    %vm57 = vcmask 1041409
    %v58 = vsel %vm57, %v56, %v52
    %v59 = vrot.slane %v54, 6
    %vm60 = vcmask 1042434
    %v61 = vsel %vm60, %v59, %v58
    %v62 = vrot.slane %v55, 5
    %vm63 = vcmask 1043459
    %v64 = vsel %vm63, %v62, %v61
    %v65 = vpack.c.b16 %v64, %v64
    %vm66 = vcmask 64512
    %v68 = vsel %vm66, %v65, 0
    %vm70 = vcmask 1043456
    %v72 = vsel %vm70, %v17, 0
    %74 = vmatpush.bf16.msra.mxu0 0
    %75 = vmatpush.bf16.msra.mxu0 0
    %76 = vmatpush.bf16.msra.mxu0 0
    %77 = vmatpush.bf16.msra.mxu0 0
    %78 = vmatpush.bf16.msra.mxu0 0
    %79 = vmatpush.bf16.msra.mxu0 0
    %80 = vmatpush.bf16.msra.mxu0 0
    %81 = vmatpush.bf16.msra.mxu0 %v72
    %82 = vmatmul.bf16.gmra.mxu0 %v68
    %v83 = vpop.f32.mrf.mxu0
    %v84 = vadd.f32 %v47, %v83
    %v85 = vpop.f32.mrf.mxu0
    %86 = vdwg.mxu0
    %v87 = vrot.slane %v52, 1
    %v88 = vsel %vm57, %v53, %v87
    %v89 = vrot.slane %v54, 7
    %v90 = vsel %vm60, %v89, %v88
    %v91 = vrot.slane %v55, 6
    %v92 = vsel %vm63, %v91, %v90
    %v93 = vpack.c.b16 %v92, %v92
    %v95 = vsel %vm66, %v93, 0
    %97 = vmatpush.bf16.msra.mxu0 0
    %98 = vmatpush.bf16.msra.mxu0 0
    %99 = vmatpush.bf16.msra.mxu0 0
    %100 = vmatpush.bf16.msra.mxu0 0
    %101 = vmatpush.bf16.msra.mxu0 0
    %102 = vmatpush.bf16.msra.mxu0 0
    %103 = vmatpush.bf16.msra.mxu0 0
    %104 = vmatpush.bf16.msra.mxu0 %v72
    %105 = vmatmul.bf16.gmra.mxu0 %v95
    %v106 = vpop.f32.mrf.mxu0
    %v107 = vadd.f32 %v47, %v106
    %v108 = vpop.f32.mrf.mxu0
    %109 = vdwg.mxu0
    %v110 = vrot.slane %v52, 2
    %v111 = vrot.slane %v53, 1
    %v112 = vsel %vm57, %v111, %v110
    %v113 = vsel %vm60, %v54, %v112
    %v114 = vrot.slane %v55, 7
    %v115 = vsel %vm63, %v114, %v113
    %v116 = vpack.c.b16 %v115, %v115
    %v118 = vsel %vm66, %v116, 0
    %120 = vmatpush.bf16.msra.mxu0 0
    %121 = vmatpush.bf16.msra.mxu0 0
    %122 = vmatpush.bf16.msra.mxu0 0
    %123 = vmatpush.bf16.msra.mxu0 0
    %124 = vmatpush.bf16.msra.mxu0 0
    %125 = vmatpush.bf16.msra.mxu0 0
    %126 = vmatpush.bf16.msra.mxu0 0
    %127 = vmatpush.bf16.msra.mxu0 %v72
    %128 = vmatmul.bf16.gmra.mxu0 %v118
    %v129 = vpop.f32.mrf.mxu0
    %v130 = vadd.f32 %v47, %v129
    %v131 = vpop.f32.mrf.mxu0
    %132 = vdwg.mxu0
    %v133 = vrot.slane %v52, 3
    %v134 = vrot.slane %v53, 2
    %v135 = vsel %vm57, %v134, %v133
    %v136 = vrot.slane %v54, 1
    %v137 = vsel %vm60, %v136, %v135
    %v138 = vsel %vm63, %v55, %v137
    %v139 = vpack.c.b16 %v138, %v138
    %v141 = vsel %vm66, %v139, 0
    %143 = vmatpush.bf16.msra.mxu0 0
    %144 = vmatpush.bf16.msra.mxu0 0
    %145 = vmatpush.bf16.msra.mxu0 0
    %146 = vmatpush.bf16.msra.mxu0 0
    %147 = vmatpush.bf16.msra.mxu0 0
    %148 = vmatpush.bf16.msra.mxu0 0
    %149 = vmatpush.bf16.msra.mxu0 0
    %150 = vmatpush.bf16.msra.mxu0 %v72
    %151 = vmatmul.bf16.gmra.mxu0 %v141
    %v152 = vpop.f32.mrf.mxu0
    %v153 = vadd.f32 %v47, %v152
    %v154 = vpop.f32.mrf.mxu0
    %155 = vdwg.mxu0
    %v156 = vrot.slane %v52, 4
    %v157 = vrot.slane %v53, 3
    %v158 = vsel %vm57, %v157, %v156
    %v159 = vrot.slane %v54, 2
    %v160 = vsel %vm60, %v159, %v158
    %v161 = vrot.slane %v55, 1
    %v162 = vsel %vm63, %v161, %v160
    %v163 = vpack.c.b16 %v162, %v162
    %v165 = vsel %vm66, %v163, 0
    %167 = vmatpush.bf16.msra.mxu0 0
    %168 = vmatpush.bf16.msra.mxu0 0
    %169 = vmatpush.bf16.msra.mxu0 0
    %170 = vmatpush.bf16.msra.mxu0 0
    %171 = vmatpush.bf16.msra.mxu0 0
    %172 = vmatpush.bf16.msra.mxu0 0
    %173 = vmatpush.bf16.msra.mxu0 0
    %174 = vmatpush.bf16.msra.mxu0 %v72
    %175 = vmatmul.bf16.gmra.mxu0 %v165
    %v176 = vpop.f32.mrf.mxu0
    %v177 = vadd.f32 %v47, %v176
    %v178 = vpop.f32.mrf.mxu0
    %179 = vdwg.mxu0
    %v180 = vrot.slane %v52, 5
    %v181 = vrot.slane %v53, 4
    %v182 = vsel %vm57, %v181, %v180
    %v183 = vrot.slane %v54, 3
    %v184 = vsel %vm60, %v183, %v182
    %v185 = vrot.slane %v55, 2
    %v186 = vsel %vm63, %v185, %v184
    %v187 = vpack.c.b16 %v186, %v186
    %v189 = vsel %vm66, %v187, 0
    %191 = vmatpush.bf16.msra.mxu0 0
    %192 = vmatpush.bf16.msra.mxu0 0
    %193 = vmatpush.bf16.msra.mxu0 0
    %194 = vmatpush.bf16.msra.mxu0 0
    %195 = vmatpush.bf16.msra.mxu0 0
    %196 = vmatpush.bf16.msra.mxu0 0
    %197 = vmatpush.bf16.msra.mxu0 0
    %198 = vmatpush.bf16.msra.mxu0 %v72
    %199 = vmatmul.bf16.gmra.mxu0 %v189
    %v200 = vpop.f32.mrf.mxu0
    %v201 = vadd.f32 %v47, %v200
    %v202 = vpop.f32.mrf.mxu0
    %203 = vdwg.mxu0
    %v204 = vrot.slane %v52, 6
    %v205 = vrot.slane %v53, 5
    %v206 = vsel %vm57, %v205, %v204
    %v207 = vrot.slane %v54, 4
    %v208 = vsel %vm60, %v207, %v206
    %v209 = vrot.slane %v55, 3
    %v210 = vsel %vm63, %v209, %v208
    %v211 = vpack.c.b16 %v210, %v210
    %v213 = vsel %vm66, %v211, 0
    %215 = vmatpush.bf16.msra.mxu0 0
    %216 = vmatpush.bf16.msra.mxu0 0
    %217 = vmatpush.bf16.msra.mxu0 0
    %218 = vmatpush.bf16.msra.mxu0 0
    %219 = vmatpush.bf16.msra.mxu0 0
    %220 = vmatpush.bf16.msra.mxu0 0
    %221 = vmatpush.bf16.msra.mxu0 0
    %222 = vmatpush.bf16.msra.mxu0 %v72
    %223 = vmatmul.bf16.gmra.mxu0 %v213
    %v224 = vpop.f32.mrf.mxu0
    %v225 = vadd.f32 %v47, %v224
    %v226 = vpop.f32.mrf.mxu0
    %227 = vdwg.mxu0
    %v228 = vrot.slane %v52, 7
    %v229 = vrot.slane %v53, 6
    %v230 = vsel %vm57, %v229, %v228
    %v231 = vrot.slane %v54, 5
    %v232 = vsel %vm60, %v231, %v230
    %v233 = vrot.slane %v55, 4
    %v234 = vsel %vm63, %v233, %v232
    %v235 = vpack.c.b16 %v234, %v234
    %v237 = vsel %vm66, %v235, 0
    %239 = vmatpush.bf16.msra.mxu0 0
    %240 = vmatpush.bf16.msra.mxu0 0
    %241 = vmatpush.bf16.msra.mxu0 0
    %242 = vmatpush.bf16.msra.mxu0 0
    %243 = vmatpush.bf16.msra.mxu0 0
    %244 = vmatpush.bf16.msra.mxu0 0
    %245 = vmatpush.bf16.msra.mxu0 0
    %246 = vmatpush.bf16.msra.mxu0 %v72
    %247 = vmatmul.bf16.gmra.mxu0 %v237
    %v248 = vpop.f32.mrf.mxu0
    %v249 = vadd.f32 %v47, %v248
    %v250 = vpop.f32.mrf.mxu0
    %251 = vdwg.mxu0
    %vm252 = vcmask 261120
    %v254 = vsel %vm252, 0, 0
    %256 = vmatpush.bf16.msra.mxu0 0
    %257 = vmatpush.bf16.msra.mxu0 0
    %258 = vmatpush.bf16.msra.mxu0 0
    %259 = vmatpush.bf16.msra.mxu0 0
    %260 = vmatpush.bf16.msra.mxu0 0
    %261 = vmatpush.bf16.msra.mxu0 0
    %262 = vmatpush.bf16.msra.mxu0 %v23
    %263 = vmatpush.bf16.msra.mxu0 %v22
    %264 = vmatmul.bf16.gmra.mxu0 %v254
    %v265 = vpop.f32.mrf.mxu0
    %v266 = vadd.f32 0.0, %v265
    %v267 = vpop.f32.mrf.mxu0
    %268 = vdwg.mxu0
    %v269 = vadd.f32 %v84, %v266
    %v270 = vtanh.pop %v269
    %v271 = vpack.c.bf16 %v270, %v270
    %272 = vmatpush.bf16.msra.mxu0 0
    %273 = vmatpush.bf16.msra.mxu0 0
    %274 = vmatpush.bf16.msra.mxu0 0
    %275 = vmatpush.bf16.msra.mxu0 0
    %276 = vmatpush.bf16.msra.mxu0 0
    %277 = vmatpush.bf16.msra.mxu0 0
    %278 = vmatpush.bf16.msra.mxu0 %v35
    %279 = vmatpush.bf16.msra.mxu0 %v34
    %280 = vmatmul.bf16.gmra.mxu0 %v254
    %v281 = vpop.f32.mrf.mxu0
    %v282 = vadd.f32 0.0, %v281
    %v283 = vpop.f32.mrf.mxu0
    %284 = vdwg.mxu0
    %v286 = vsel %vm252, %v271, 0
    %288 = vmatpush.bf16.msra.mxu0 0
    %289 = vmatpush.bf16.msra.mxu0 0
    %290 = vmatpush.bf16.msra.mxu0 0
    %291 = vmatpush.bf16.msra.mxu0 0
    %292 = vmatpush.bf16.msra.mxu0 0
    %293 = vmatpush.bf16.msra.mxu0 0
    %294 = vmatpush.bf16.msra.mxu0 %v29
    %295 = vmatpush.bf16.msra.mxu0 %v28
    %296 = vmatmul.bf16.gmra.mxu0 %v286
    %v297 = vpop.f32.mrf.mxu0
    %v298 = vadd.f32 %v282, %v297
    %v299 = vpop.f32.mrf.mxu0
    %300 = vdwg.mxu0
    %v301 = vperm.slane %v37, 0
    %v302 = vadd.f32 %v298, %v301
    %v303 = vtanh.pop %v302
    %v304 = vpack.c.bf16 %v303, %v303
    %305 = vmatpush.bf16.msra.mxu0 0
    %306 = vmatpush.bf16.msra.mxu0 0
    %307 = vmatpush.bf16.msra.mxu0 0
    %308 = vmatpush.bf16.msra.mxu0 0
    %309 = vmatpush.bf16.msra.mxu0 0
    %310 = vmatpush.bf16.msra.mxu0 0
    %311 = vmatpush.bf16.msra.mxu0 %v23
    %312 = vmatpush.bf16.msra.mxu0 %v22
    %313 = vmatmul.bf16.gmra.mxu0 %v286
    %v314 = vpop.f32.mrf.mxu0
    %v315 = vadd.f32 0.0, %v314
    %v316 = vpop.f32.mrf.mxu0
    %317 = vdwg.mxu0
    %v318 = vadd.f32 %v107, %v315
    %v319 = vtanh.pop %v318
    %v320 = vpack.c.bf16 %v319, %v319
    %v322 = vsel %vm252, %v304, 0
    %324 = vmatpush.bf16.msra.mxu0 0
    %325 = vmatpush.bf16.msra.mxu0 0
    %326 = vmatpush.bf16.msra.mxu0 0
    %327 = vmatpush.bf16.msra.mxu0 0
    %328 = vmatpush.bf16.msra.mxu0 0
    %329 = vmatpush.bf16.msra.mxu0 0
    %330 = vmatpush.bf16.msra.mxu0 %v35
    %331 = vmatpush.bf16.msra.mxu0 %v34
    %332 = vmatmul.bf16.gmra.mxu0 %v322
    %v333 = vpop.f32.mrf.mxu0
    %v334 = vadd.f32 0.0, %v333
    %v335 = vpop.f32.mrf.mxu0
    %336 = vdwg.mxu0
    %v338 = vsel %vm252, %v320, 0
    %340 = vmatpush.bf16.msra.mxu0 0
    %341 = vmatpush.bf16.msra.mxu0 0
    %342 = vmatpush.bf16.msra.mxu0 0
    %343 = vmatpush.bf16.msra.mxu0 0
    %344 = vmatpush.bf16.msra.mxu0 0
    %345 = vmatpush.bf16.msra.mxu0 0
    %346 = vmatpush.bf16.msra.mxu0 %v29
    %347 = vmatpush.bf16.msra.mxu0 %v28
    %348 = vmatmul.bf16.gmra.mxu0 %v338
    %v349 = vpop.f32.mrf.mxu0
    %v350 = vadd.f32 %v334, %v349
    %v351 = vpop.f32.mrf.mxu0
    %352 = vdwg.mxu0
    %v353 = vadd.f32 %v350, %v301
    %v354 = vtanh.pop %v353
    %v355 = vpack.c.bf16 %v354, %v354
    %356 = vmatpush.bf16.msra.mxu0 0
    %357 = vmatpush.bf16.msra.mxu0 0
    %358 = vmatpush.bf16.msra.mxu0 0
    %359 = vmatpush.bf16.msra.mxu0 0
    %360 = vmatpush.bf16.msra.mxu0 0
    %361 = vmatpush.bf16.msra.mxu0 0
    %362 = vmatpush.bf16.msra.mxu0 %v23
    %363 = vmatpush.bf16.msra.mxu0 %v22
    %364 = vmatmul.bf16.gmra.mxu0 %v338
    %v365 = vpop.f32.mrf.mxu0
    %v366 = vadd.f32 0.0, %v365
    %v367 = vpop.f32.mrf.mxu0
    %368 = vdwg.mxu0
    %v369 = vadd.f32 %v130, %v366
    %v370 = vtanh.pop %v369
    %v371 = vpack.c.bf16 %v370, %v370
    %v373 = vsel %vm252, %v355, 0
    %375 = vmatpush.bf16.msra.mxu0 0
    %376 = vmatpush.bf16.msra.mxu0 0
    %377 = vmatpush.bf16.msra.mxu0 0
    %378 = vmatpush.bf16.msra.mxu0 0
    %379 = vmatpush.bf16.msra.mxu0 0
    %380 = vmatpush.bf16.msra.mxu0 0
    %381 = vmatpush.bf16.msra.mxu0 %v35
    %382 = vmatpush.bf16.msra.mxu0 %v34
    %383 = vmatmul.bf16.gmra.mxu0 %v373
    %v384 = vpop.f32.mrf.mxu0
    %v385 = vadd.f32 0.0, %v384
    %v386 = vpop.f32.mrf.mxu0
    %387 = vdwg.mxu0
    %v389 = vsel %vm252, %v371, 0
    %391 = vmatpush.bf16.msra.mxu0 0
    %392 = vmatpush.bf16.msra.mxu0 0
    %393 = vmatpush.bf16.msra.mxu0 0
    %394 = vmatpush.bf16.msra.mxu0 0
    %395 = vmatpush.bf16.msra.mxu0 0
    %396 = vmatpush.bf16.msra.mxu0 0
    %397 = vmatpush.bf16.msra.mxu0 %v29
    %398 = vmatpush.bf16.msra.mxu0 %v28
    %399 = vmatmul.bf16.gmra.mxu0 %v389
    %v400 = vpop.f32.mrf.mxu0
    %v401 = vadd.f32 %v385, %v400
    %v402 = vpop.f32.mrf.mxu0
    %403 = vdwg.mxu0
    %v404 = vadd.f32 %v401, %v301
    %v405 = vtanh.pop %v404
    %v406 = vpack.c.bf16 %v405, %v405
    %407 = vmatpush.bf16.msra.mxu0 0
    %408 = vmatpush.bf16.msra.mxu0 0
    %409 = vmatpush.bf16.msra.mxu0 0
    %410 = vmatpush.bf16.msra.mxu0 0
    %411 = vmatpush.bf16.msra.mxu0 0
    %412 = vmatpush.bf16.msra.mxu0 0
    %413 = vmatpush.bf16.msra.mxu0 %v23
    %414 = vmatpush.bf16.msra.mxu0 %v22
    %415 = vmatmul.bf16.gmra.mxu0 %v389
    %v416 = vpop.f32.mrf.mxu0
    %v417 = vadd.f32 0.0, %v416
    %v418 = vpop.f32.mrf.mxu0
    %419 = vdwg.mxu0
    %v420 = vadd.f32 %v153, %v417
    %v421 = vtanh.pop %v420
    %v422 = vpack.c.bf16 %v421, %v421
    %v424 = vsel %vm252, %v406, 0
    %426 = vmatpush.bf16.msra.mxu0 0
    %427 = vmatpush.bf16.msra.mxu0 0
    %428 = vmatpush.bf16.msra.mxu0 0
    %429 = vmatpush.bf16.msra.mxu0 0
    %430 = vmatpush.bf16.msra.mxu0 0
    %431 = vmatpush.bf16.msra.mxu0 0
    %432 = vmatpush.bf16.msra.mxu0 %v35
    %433 = vmatpush.bf16.msra.mxu0 %v34
    %434 = vmatmul.bf16.gmra.mxu0 %v424
    %v435 = vpop.f32.mrf.mxu0
    %v436 = vadd.f32 0.0, %v435
    %v437 = vpop.f32.mrf.mxu0
    %438 = vdwg.mxu0
    %v440 = vsel %vm252, %v422, 0
    %442 = vmatpush.bf16.msra.mxu0 0
    %443 = vmatpush.bf16.msra.mxu0 0
    %444 = vmatpush.bf16.msra.mxu0 0
    %445 = vmatpush.bf16.msra.mxu0 0
    %446 = vmatpush.bf16.msra.mxu0 0
    %447 = vmatpush.bf16.msra.mxu0 0
    %448 = vmatpush.bf16.msra.mxu0 %v29
    %449 = vmatpush.bf16.msra.mxu0 %v28
    %450 = vmatmul.bf16.gmra.mxu0 %v440
    %v451 = vpop.f32.mrf.mxu0
    %v452 = vadd.f32 %v436, %v451
    %v453 = vpop.f32.mrf.mxu0
    %454 = vdwg.mxu0
    %v455 = vadd.f32 %v452, %v301
    %v456 = vtanh.pop %v455
    %v457 = vpack.c.bf16 %v456, %v456
    %458 = vmatpush.bf16.msra.mxu0 0
    %459 = vmatpush.bf16.msra.mxu0 0
    %460 = vmatpush.bf16.msra.mxu0 0
    %461 = vmatpush.bf16.msra.mxu0 0
    %462 = vmatpush.bf16.msra.mxu0 0
    %463 = vmatpush.bf16.msra.mxu0 0
    %464 = vmatpush.bf16.msra.mxu0 %v23
    %465 = vmatpush.bf16.msra.mxu0 %v22
    %466 = vmatmul.bf16.gmra.mxu0 %v440
    %v467 = vpop.f32.mrf.mxu0
    %v468 = vadd.f32 0.0, %v467
    %v469 = vpop.f32.mrf.mxu0
    %470 = vdwg.mxu0
    %v471 = vadd.f32 %v177, %v468
    %v472 = vtanh.pop %v471
    %v473 = vpack.c.bf16 %v472, %v472
    %v475 = vsel %vm252, %v457, 0
    %477 = vmatpush.bf16.msra.mxu0 0
    %478 = vmatpush.bf16.msra.mxu0 0
    %479 = vmatpush.bf16.msra.mxu0 0
    %480 = vmatpush.bf16.msra.mxu0 0
    %481 = vmatpush.bf16.msra.mxu0 0
    %482 = vmatpush.bf16.msra.mxu0 0
    %483 = vmatpush.bf16.msra.mxu0 %v35
    %484 = vmatpush.bf16.msra.mxu0 %v34
    %485 = vmatmul.bf16.gmra.mxu0 %v475
    %v486 = vpop.f32.mrf.mxu0
    %v487 = vadd.f32 0.0, %v486
    %v488 = vpop.f32.mrf.mxu0
    %489 = vdwg.mxu0
    %v491 = vsel %vm252, %v473, 0
    %493 = vmatpush.bf16.msra.mxu0 0
    %494 = vmatpush.bf16.msra.mxu0 0
    %495 = vmatpush.bf16.msra.mxu0 0
    %496 = vmatpush.bf16.msra.mxu0 0
    %497 = vmatpush.bf16.msra.mxu0 0
    %498 = vmatpush.bf16.msra.mxu0 0
    %499 = vmatpush.bf16.msra.mxu0 %v29
    %500 = vmatpush.bf16.msra.mxu0 %v28
    %501 = vmatmul.bf16.gmra.mxu0 %v491
    %v502 = vpop.f32.mrf.mxu0
    %v503 = vadd.f32 %v487, %v502
    %v504 = vpop.f32.mrf.mxu0
    %505 = vdwg.mxu0
    %v506 = vadd.f32 %v503, %v301
    %v507 = vtanh.pop %v506
    %v508 = vpack.c.bf16 %v507, %v507
    %509 = vmatpush.bf16.msra.mxu0 0
    %510 = vmatpush.bf16.msra.mxu0 0
    %511 = vmatpush.bf16.msra.mxu0 0
    %512 = vmatpush.bf16.msra.mxu0 0
    %513 = vmatpush.bf16.msra.mxu0 0
    %514 = vmatpush.bf16.msra.mxu0 0
    %515 = vmatpush.bf16.msra.mxu0 %v23
    %516 = vmatpush.bf16.msra.mxu0 %v22
    %517 = vmatmul.bf16.gmra.mxu0 %v491
    %v518 = vpop.f32.mrf.mxu0
    %v519 = vadd.f32 0.0, %v518
    %v520 = vpop.f32.mrf.mxu0
    %521 = vdwg.mxu0
    %v522 = vadd.f32 %v201, %v519
    %v523 = vtanh.pop %v522
    %v524 = vpack.c.bf16 %v523, %v523
    %v526 = vsel %vm252, %v508, 0
    %528 = vmatpush.bf16.msra.mxu0 0
    %529 = vmatpush.bf16.msra.mxu0 0
    %530 = vmatpush.bf16.msra.mxu0 0
    %531 = vmatpush.bf16.msra.mxu0 0
    %532 = vmatpush.bf16.msra.mxu0 0
    %533 = vmatpush.bf16.msra.mxu0 0
    %534 = vmatpush.bf16.msra.mxu0 %v35
    %535 = vmatpush.bf16.msra.mxu0 %v34
    %536 = vmatmul.bf16.gmra.mxu0 %v526
    %v537 = vpop.f32.mrf.mxu0
    %v538 = vadd.f32 0.0, %v537
    %v539 = vpop.f32.mrf.mxu0
    %540 = vdwg.mxu0
    %v542 = vsel %vm252, %v524, 0
    %544 = vmatpush.bf16.msra.mxu0 0
    %545 = vmatpush.bf16.msra.mxu0 0
    %546 = vmatpush.bf16.msra.mxu0 0
    %547 = vmatpush.bf16.msra.mxu0 0
    %548 = vmatpush.bf16.msra.mxu0 0
    %549 = vmatpush.bf16.msra.mxu0 0
    %550 = vmatpush.bf16.msra.mxu0 %v29
    %551 = vmatpush.bf16.msra.mxu0 %v28
    %552 = vmatmul.bf16.gmra.mxu0 %v542
    %v553 = vpop.f32.mrf.mxu0
    %v554 = vadd.f32 %v538, %v553
    %v555 = vpop.f32.mrf.mxu0
    %556 = vdwg.mxu0
    %v557 = vadd.f32 %v554, %v301
    %v558 = vtanh.pop %v557
    %v559 = vpack.c.bf16 %v558, %v558
    %560 = vmatpush.bf16.msra.mxu0 0
    %561 = vmatpush.bf16.msra.mxu0 0
    %562 = vmatpush.bf16.msra.mxu0 0
    %563 = vmatpush.bf16.msra.mxu0 0
    %564 = vmatpush.bf16.msra.mxu0 0
    %565 = vmatpush.bf16.msra.mxu0 0
    %566 = vmatpush.bf16.msra.mxu0 %v23
    %567 = vmatpush.bf16.msra.mxu0 %v22
    %568 = vmatmul.bf16.gmra.mxu0 %v542
    %v569 = vpop.f32.mrf.mxu0
    %v570 = vadd.f32 0.0, %v569
    %v571 = vpop.f32.mrf.mxu0
    %572 = vdwg.mxu0
    %v573 = vadd.f32 %v225, %v570
    %v574 = vtanh.pop %v573
    %v575 = vpack.c.bf16 %v574, %v574
    %v577 = vsel %vm252, %v559, 0
    %579 = vmatpush.bf16.msra.mxu0 0
    %580 = vmatpush.bf16.msra.mxu0 0
    %581 = vmatpush.bf16.msra.mxu0 0
    %582 = vmatpush.bf16.msra.mxu0 0
    %583 = vmatpush.bf16.msra.mxu0 0
    %584 = vmatpush.bf16.msra.mxu0 0
    %585 = vmatpush.bf16.msra.mxu0 %v35
    %586 = vmatpush.bf16.msra.mxu0 %v34
    %587 = vmatmul.bf16.gmra.mxu0 %v577
    %v588 = vpop.f32.mrf.mxu0
    %v589 = vadd.f32 0.0, %v588
    %v590 = vpop.f32.mrf.mxu0
    %591 = vdwg.mxu0
    %v593 = vsel %vm252, %v575, 0
    %595 = vmatpush.bf16.msra.mxu0 0
    %596 = vmatpush.bf16.msra.mxu0 0
    %597 = vmatpush.bf16.msra.mxu0 0
    %598 = vmatpush.bf16.msra.mxu0 0
    %599 = vmatpush.bf16.msra.mxu0 0
    %600 = vmatpush.bf16.msra.mxu0 0
    %601 = vmatpush.bf16.msra.mxu0 %v29
    %602 = vmatpush.bf16.msra.mxu0 %v28
    %603 = vmatmul.bf16.gmra.mxu0 %v593
    %v604 = vpop.f32.mrf.mxu0
    %v605 = vadd.f32 %v589, %v604
    %v606 = vpop.f32.mrf.mxu0
    %607 = vdwg.mxu0
    %v608 = vadd.f32 %v605, %v301
    %v609 = vtanh.pop %v608
    %v610 = vpack.c.bf16 %v609, %v609
    %611 = vmatpush.bf16.msra.mxu0 0
    %612 = vmatpush.bf16.msra.mxu0 0
    %613 = vmatpush.bf16.msra.mxu0 0
    %614 = vmatpush.bf16.msra.mxu0 0
    %615 = vmatpush.bf16.msra.mxu0 0
    %616 = vmatpush.bf16.msra.mxu0 0
    %617 = vmatpush.bf16.msra.mxu0 %v23
    %618 = vmatpush.bf16.msra.mxu0 %v22
    %619 = vmatmul.bf16.gmra.mxu0 %v593
    %v620 = vpop.f32.mrf.mxu0
    %v621 = vadd.f32 0.0, %v620
    %v622 = vpop.f32.mrf.mxu0
    %623 = vdwg.mxu0
    %v624 = vadd.f32 %v249, %v621
    %v625 = vtanh.pop %v624
    %v626 = vpack.c.bf16 %v625, %v625
    %v628 = vsel %vm252, %v610, 0
    %630 = vmatpush.bf16.msra.mxu0 0
    %631 = vmatpush.bf16.msra.mxu0 0
    %632 = vmatpush.bf16.msra.mxu0 0
    %633 = vmatpush.bf16.msra.mxu0 0
    %634 = vmatpush.bf16.msra.mxu0 0
    %635 = vmatpush.bf16.msra.mxu0 0
    %636 = vmatpush.bf16.msra.mxu0 %v35
    %637 = vmatpush.bf16.msra.mxu0 %v34
    %638 = vmatmul.bf16.gmra.mxu0 %v628
    %v639 = vpop.f32.mrf.mxu0
    %v640 = vadd.f32 0.0, %v639
    %v641 = vpop.f32.mrf.mxu0
    %642 = vdwg.mxu0
    %v644 = vsel %vm252, %v626, 0
    %646 = vmatpush.bf16.msra.mxu0 0
    %647 = vmatpush.bf16.msra.mxu0 0
    %648 = vmatpush.bf16.msra.mxu0 0
    %649 = vmatpush.bf16.msra.mxu0 0
    %650 = vmatpush.bf16.msra.mxu0 0
    %651 = vmatpush.bf16.msra.mxu0 0
    %652 = vmatpush.bf16.msra.mxu0 %v29
    %653 = vmatpush.bf16.msra.mxu0 %v28
    %654 = vmatmul.bf16.gmra.mxu0 %v644
    %v655 = vpop.f32.mrf.mxu0
    %v656 = vadd.f32 %v640, %v655
    %v657 = vpop.f32.mrf.mxu0
    %658 = vdwg.mxu0
    %v659 = vadd.f32 %v656, %v301
    %v660 = vtanh.pop %v659
    %v661 = vpack.c.bf16 %v660, %v660
    %v662 = vperm.slane %v38, 0
    %v663 = vadd.f32 %v662, 0.0
    %v664 = vld [vmem:[%s2] sm:$0xf]
    %v665 = vld [vmem:[%s2 + $0x4] sm:$0xf]
    %v666 = vld [vmem:[%s2 + $0x8] sm:$0xf]
    %v667 = vld [vmem:[%s2 + $0xc] sm:$0xf]
    %v672 = vunpack.c.l.b16 %v664
    %v673 = vunpack.c.l.b16 %v665
    %v674 = vunpack.c.l.b16 %v666
    %v675 = vunpack.c.l.b16 %v667
    %v676 = vpack.c.b16 %v673, %v672
    %v677 = vpack.c.b16 %v675, %v674
    %680 = vmatpush.bf16.msra.mxu0 0
    %681 = vmatpush.bf16.msra.mxu0 0
    %682 = vmatpush.bf16.msra.mxu0 0
    %683 = vmatpush.bf16.msra.mxu0 0
    %684 = vmatpush.bf16.msra.mxu0 0
    %685 = vmatpush.bf16.msra.mxu0 0
    %686 = vmatpush.bf16.msra.mxu0 %v677
    %687 = vmatpush.bf16.msra.mxu0 %v676
    %688 = vmatmul.bf16.gmra.mxu0 %v322
    %v689 = vpop.f32.mrf.mxu0
    %v690 = vadd.f32 0.0, %v689
    %v691 = vpop.f32.mrf.mxu0
    %692 = vdwg.mxu0
    %v693 = vadd.f32 %v663, %v690
    %s694 = scalar_lea.vmem %s2, 16
    %v695 = vld [vmem:[%s694] sm:$0xf]
    %v696 = vld [vmem:[%s694 + $0x4] sm:$0xf]
    %v697 = vld [vmem:[%s694 + $0x8] sm:$0xf]
    %v698 = vld [vmem:[%s694 + $0xc] sm:$0xf]
    %v703 = vunpack.c.l.b16 %v695
    %v704 = vunpack.c.l.b16 %v696
    %v705 = vunpack.c.l.b16 %v697
    %v706 = vunpack.c.l.b16 %v698
    %v707 = vpack.c.b16 %v704, %v703
    %v708 = vpack.c.b16 %v706, %v705
    %711 = vmatpush.bf16.msra.mxu0 0
    %712 = vmatpush.bf16.msra.mxu0 0
    %713 = vmatpush.bf16.msra.mxu0 0
    %714 = vmatpush.bf16.msra.mxu0 0
    %715 = vmatpush.bf16.msra.mxu0 0
    %716 = vmatpush.bf16.msra.mxu0 0
    %717 = vmatpush.bf16.msra.mxu0 %v708
    %718 = vmatpush.bf16.msra.mxu0 %v707
    %719 = vmatmul.bf16.gmra.mxu0 %v373
    %v720 = vpop.f32.mrf.mxu0
    %v721 = vadd.f32 0.0, %v720
    %v722 = vpop.f32.mrf.mxu0
    %723 = vdwg.mxu0
    %v724 = vadd.f32 %v693, %v721
    %s725 = scalar_lea.vmem %s2, 32
    %v726 = vld [vmem:[%s725] sm:$0xf]
    %v727 = vld [vmem:[%s725 + $0x4] sm:$0xf]
    %v728 = vld [vmem:[%s725 + $0x8] sm:$0xf]
    %v729 = vld [vmem:[%s725 + $0xc] sm:$0xf]
    %v734 = vunpack.c.l.b16 %v726
    %v735 = vunpack.c.l.b16 %v727
    %v736 = vunpack.c.l.b16 %v728
    %v737 = vunpack.c.l.b16 %v729
    %v738 = vpack.c.b16 %v735, %v734
    %v739 = vpack.c.b16 %v737, %v736
    %742 = vmatpush.bf16.msra.mxu0 0
    %743 = vmatpush.bf16.msra.mxu0 0
    %744 = vmatpush.bf16.msra.mxu0 0
    %745 = vmatpush.bf16.msra.mxu0 0
    %746 = vmatpush.bf16.msra.mxu0 0
    %747 = vmatpush.bf16.msra.mxu0 0
    %748 = vmatpush.bf16.msra.mxu0 %v739
    %749 = vmatpush.bf16.msra.mxu0 %v738
    %750 = vmatmul.bf16.gmra.mxu0 %v424
    %v751 = vpop.f32.mrf.mxu0
    %v752 = vadd.f32 0.0, %v751
    %v753 = vpop.f32.mrf.mxu0
    %754 = vdwg.mxu0
    %v755 = vadd.f32 %v724, %v752
    %s756 = scalar_lea.vmem %s2, 48
    %v757 = vld [vmem:[%s756] sm:$0xf]
    %v758 = vld [vmem:[%s756 + $0x4] sm:$0xf]
    %v759 = vld [vmem:[%s756 + $0x8] sm:$0xf]
    %v760 = vld [vmem:[%s756 + $0xc] sm:$0xf]
    %v765 = vunpack.c.l.b16 %v757
    %v766 = vunpack.c.l.b16 %v758
    %v767 = vunpack.c.l.b16 %v759
    %v768 = vunpack.c.l.b16 %v760
    %v769 = vpack.c.b16 %v766, %v765
    %v770 = vpack.c.b16 %v768, %v767
    %773 = vmatpush.bf16.msra.mxu0 0
    %774 = vmatpush.bf16.msra.mxu0 0
    %775 = vmatpush.bf16.msra.mxu0 0
    %776 = vmatpush.bf16.msra.mxu0 0
    %777 = vmatpush.bf16.msra.mxu0 0
    %778 = vmatpush.bf16.msra.mxu0 0
    %779 = vmatpush.bf16.msra.mxu0 %v770
    %780 = vmatpush.bf16.msra.mxu0 %v769
    %781 = vmatmul.bf16.gmra.mxu0 %v475
    %v782 = vpop.f32.mrf.mxu0
    %v783 = vadd.f32 0.0, %v782
    %v784 = vpop.f32.mrf.mxu0
    %785 = vdwg.mxu0
    %v786 = vadd.f32 %v755, %v783
    %s787 = scalar_lea.vmem %s2, 64
    %v788 = vld [vmem:[%s787] sm:$0xf]
    %v789 = vld [vmem:[%s787 + $0x4] sm:$0xf]
    %v790 = vld [vmem:[%s787 + $0x8] sm:$0xf]
    %v791 = vld [vmem:[%s787 + $0xc] sm:$0xf]
    %v796 = vunpack.c.l.b16 %v788
    %v797 = vunpack.c.l.b16 %v789
    %v798 = vunpack.c.l.b16 %v790
    %v799 = vunpack.c.l.b16 %v791
    %v800 = vpack.c.b16 %v797, %v796
    %v801 = vpack.c.b16 %v799, %v798
    %804 = vmatpush.bf16.msra.mxu0 0
    %805 = vmatpush.bf16.msra.mxu0 0
    %806 = vmatpush.bf16.msra.mxu0 0
    %807 = vmatpush.bf16.msra.mxu0 0
    %808 = vmatpush.bf16.msra.mxu0 0
    %809 = vmatpush.bf16.msra.mxu0 0
    %810 = vmatpush.bf16.msra.mxu0 %v801
    %811 = vmatpush.bf16.msra.mxu0 %v800
    %812 = vmatmul.bf16.gmra.mxu0 %v526
    %v813 = vpop.f32.mrf.mxu0
    %v814 = vadd.f32 0.0, %v813
    %v815 = vpop.f32.mrf.mxu0
    %816 = vdwg.mxu0
    %v817 = vadd.f32 %v786, %v814
    %s818 = scalar_lea.vmem %s2, 80
    %v819 = vld [vmem:[%s818] sm:$0xf]
    %v820 = vld [vmem:[%s818 + $0x4] sm:$0xf]
    %v821 = vld [vmem:[%s818 + $0x8] sm:$0xf]
    %v822 = vld [vmem:[%s818 + $0xc] sm:$0xf]
    %v827 = vunpack.c.l.b16 %v819
    %v828 = vunpack.c.l.b16 %v820
    %v829 = vunpack.c.l.b16 %v821
    %v830 = vunpack.c.l.b16 %v822
    %v831 = vpack.c.b16 %v828, %v827
    %v832 = vpack.c.b16 %v830, %v829
    %835 = vmatpush.bf16.msra.mxu0 0
    %836 = vmatpush.bf16.msra.mxu0 0
    %837 = vmatpush.bf16.msra.mxu0 0
    %838 = vmatpush.bf16.msra.mxu0 0
    %839 = vmatpush.bf16.msra.mxu0 0
    %840 = vmatpush.bf16.msra.mxu0 0
    %841 = vmatpush.bf16.msra.mxu0 %v832
    %842 = vmatpush.bf16.msra.mxu0 %v831
    %843 = vmatmul.bf16.gmra.mxu0 %v577
    %v844 = vpop.f32.mrf.mxu0
    %v845 = vadd.f32 0.0, %v844
    %v846 = vpop.f32.mrf.mxu0
    %847 = vdwg.mxu0
    %v848 = vadd.f32 %v817, %v845
    %s849 = scalar_lea.vmem %s2, 96
    %v850 = vld [vmem:[%s849] sm:$0xf]
    %v851 = vld [vmem:[%s849 + $0x4] sm:$0xf]
    %v852 = vld [vmem:[%s849 + $0x8] sm:$0xf]
    %v853 = vld [vmem:[%s849 + $0xc] sm:$0xf]
    %v858 = vunpack.c.l.b16 %v850
    %v859 = vunpack.c.l.b16 %v851
    %v860 = vunpack.c.l.b16 %v852
    %v861 = vunpack.c.l.b16 %v853
    %v862 = vpack.c.b16 %v859, %v858
    %v863 = vpack.c.b16 %v861, %v860
    %866 = vmatpush.bf16.msra.mxu0 0
    %867 = vmatpush.bf16.msra.mxu0 0
    %868 = vmatpush.bf16.msra.mxu0 0
    %869 = vmatpush.bf16.msra.mxu0 0
    %870 = vmatpush.bf16.msra.mxu0 0
    %871 = vmatpush.bf16.msra.mxu0 0
    %872 = vmatpush.bf16.msra.mxu0 %v863
    %873 = vmatpush.bf16.msra.mxu0 %v862
    %874 = vmatmul.bf16.gmra.mxu0 %v628
    %v875 = vpop.f32.mrf.mxu0
    %v876 = vadd.f32 0.0, %v875
    %v877 = vpop.f32.mrf.mxu0
    %878 = vdwg.mxu0
    %v879 = vadd.f32 %v848, %v876
    %s880 = scalar_lea.vmem %s2, 112
    %v881 = vld [vmem:[%s880] sm:$0xf]
    %v882 = vld [vmem:[%s880 + $0x4] sm:$0xf]
    %v883 = vld [vmem:[%s880 + $0x8] sm:$0xf]
    %v884 = vld [vmem:[%s880 + $0xc] sm:$0xf]
    %v889 = vunpack.c.l.b16 %v881
    %v890 = vunpack.c.l.b16 %v882
    %v891 = vunpack.c.l.b16 %v883
    %v892 = vunpack.c.l.b16 %v884
    %v893 = vpack.c.b16 %v890, %v889
    %v894 = vpack.c.b16 %v892, %v891
    %v898 = vsel %vm252, %v661, 0
    %900 = vmatpush.bf16.msra.mxu0 0
    %901 = vmatpush.bf16.msra.mxu0 0
    %902 = vmatpush.bf16.msra.mxu0 0
    %903 = vmatpush.bf16.msra.mxu0 0
    %904 = vmatpush.bf16.msra.mxu0 0
    %905 = vmatpush.bf16.msra.mxu0 0
    %906 = vmatpush.bf16.msra.mxu0 %v894
    %907 = vmatpush.bf16.msra.mxu0 %v893
    %908 = vmatmul.bf16.gmra.mxu0 %v898
    %v909 = vpop.f32.mrf.mxu0
    %v910 = vadd.f32 0.0, %v909
    %v911 = vpop.f32.mrf.mxu0
    %912 = vdwg.mxu0
    %v913 = vadd.f32 %v879, %v910
    %vm914 = vcmask 76800
    %915 = vst.msk [vmem:[#allocation2] sm:$0xf] %vm914, %v913
    // Predicated region
    $region14: #{rnn_forward.1} parent=1 // pred_check
      _
    $region15: #{rnn_forward.1} parent=1 // pred_check_branch
      %917 = sbr.rel (0) target = $region17
    $region16: #{rnn_forward.1} parent=1 // pred_region
      %919 = vsyncadd [#allocation3], 0
      %s921 = sshll.u32 [#allocation2], 4
      %s922 = int_to_ptr.vmem [resolvable:$true] %s921
      %s923 = sshll.u32 %s3, 4
      %s924 = int_to_ptr.hbm [resolvable:$true] %s923
      %926 = dma.vmem_to_hbm [thread:$0]  %s922, 64, %s924, [#allocation3]
    $region17: #{rnn_forward.1} parent=1 // pred_fallthru
      _
    // Predicated region
    $region18: #{rnn_forward.1} parent=1 // pred_check
      _
    $region19: #{rnn_forward.1} parent=1 // pred_check_branch
      %928 = sbr.rel (0) target = $region21
    $region20: #{rnn_forward.1} parent=1 // pred_region
      %930 = dma.done [#allocation3], 64
    $region21: #{rnn_forward.1} parent=1 // pred_fallthru
      _
    %931 = vsyncpa [#allocation3], 1

</llo_original>
